<compile_context>
chip_gen: v5e
topology: v5e:2x2
jax: 0.10.0
libtpu: 0.0.40
codegen_flags: <defaults>
</compile_context>

<pallas_src>
import jax
import jax.numpy as jnp
from jax.experimental import pallas as pl
from jax.experimental.pallas import tpu as pltpu

LANE = 128
SUB = 8


def _round_up(x, m):
    return ((x + m - 1) // m) * m


def _pose_table_kernel(in_ref, out_ref):
    # in_ref : (22, tile_s, 128)  rows 0-2 = r, 3-5 = t, 6-21 = init_c2w (row-major)
    # out_ref: (16, tile_s, 128)  c2w @ init_c2w, row-major, one camera per element
    r0 = in_ref[0]
    r1 = in_ref[1]
    r2 = in_ref[2]
    t0 = in_ref[3]
    t1 = in_ref[4]
    t2 = in_ref[5]

    # Rodrigues coefficients.  Approx EUP reciprocal + one Newton step (exact
    # enough for the 1e-5 tolerance; the divide leaves the VALU path).
    n2 = r0 * r0 + r1 * r1 + r2 * r2
    theta = jnp.sqrt(n2) + 1e-15
    inv = pl.reciprocal(theta, approx=True)
    inv = inv * (2.0 - theta * inv)            # Newton refinement -> ~1 ulp
    a = jnp.sin(theta) * inv                   # sin|r| / |r|
    # NOTE: (1 - cos th)/th^2 cancels in f32 for tiny |r|; the absolute error is
    # O(th^2)-scaled and far below 1e-5, and matches the PyTorch reference.
    b = (1.0 - jnp.cos(theta)) * (inv * inv)

    # R = (1 - b*n2) I + a*K + b * r r^T  -> closed-form per-camera entries.
    br0 = b * r0
    br1 = b * r1
    br2 = b * r2
    ar0 = a * r0
    ar1 = a * r1
    ar2 = a * r2
    d = 1.0 - b * n2
    c2w_rows = (
        (d + br0 * r0, br0 * r1 - ar2, br0 * r2 + ar1, t0),
        (br0 * r1 + ar2, d + br1 * r1, br1 * r2 - ar0, t1),
        (br0 * r2 - ar1, br1 * r2 + ar0, d + br2 * r2, t2),
    )

    init = [in_ref[6 + k] for k in range(16)]  # init[4*i + j] = init_c2w[i, j]

    # out[i][j] = sum_k c2w[i][k] * init[k][j]  (per-camera FMAs on the VPU).
    for i in range(3):
        ci = c2w_rows[i]
        for j in range(4):
            out_ref[4 * i + j] = (ci[0] * init[j]
                                  + ci[1] * init[4 + j]
                                  + ci[2] * init[8 + j]
                                  + ci[3] * init[12 + j])
    # Bottom row of c2w is [0,0,0,1]: grouped copy of init rows 12-15.
    out_ref[12:16] = in_ref[18:22]


def pack_pose_inputs(r, t, init_c2w=None):
    """One-time layout packing (do this at module init, not per step).

    Returns (packed, num_cams) with packed of shape (22, S, 128), camera c at
    position (c // 128, c % 128), S a multiple of 8 (padded cameras are zero).
    """
    r = jnp.asarray(r, jnp.float32)
    t = jnp.asarray(t, jnp.float32)
    num_cams = r.shape[0]
    if init_c2w is None:
        init_c2w = jnp.broadcast_to(jnp.eye(4, dtype=jnp.float32),
                                    (num_cams, 4, 4))
    init_c2w = jnp.asarray(init_c2w, jnp.float32)

    fields = jnp.concatenate(
        [r.T, t.T, init_c2w.reshape(num_cams, 16).T], axis=0)      # (22, N)
    n_pad = _round_up(num_cams, SUB * LANE)                        # full vreg blocks
    packed = jnp.zeros((22, n_pad), jnp.float32).at[:, :num_cams].set(fields)
    return packed.reshape(22, n_pad // LANE, LANE), num_cams


def pose_table_packed(packed, *, cam_tile=8192):
    """Run the kernel on a packed (22, S, 128) input; returns (16, S, 128)."""
    nfields, s_total, lane = packed.shape
    assert nfields == 22 and lane == LANE and s_total % SUB == 0

    n_blocks = s_total // SUB                      # 1024-camera vreg blocks
    desired = max(1, cam_tile // (SUB * LANE))
    if n_blocks >= 2:
        # Keep >= 2 grid steps so "parallel" can shard across v7x's 2 TCs.
        desired = max(1, min(desired, pl.cdiv(n_blocks, 2)))
    tile_blocks = min(desired, n_blocks)
    while n_blocks % tile_blocks:                  # tile must divide the grid
        tile_blocks -= 1
    tile_s = tile_blocks * SUB
    grid = (n_blocks // tile_blocks,)

    return pl.pallas_call(
        _pose_table_kernel,
        out_shape=jax.ShapeDtypeStruct((16, s_total, LANE), jnp.float32),
        grid_spec=pltpu.PrefetchScalarGridSpec(
            num_scalar_prefetch=0,
            grid=grid,
            in_specs=[pl.BlockSpec((22, tile_s, LANE), lambda i: (0, i, 0))],
            out_specs=pl.BlockSpec((16, tile_s, LANE), lambda i: (0, i, 0)),
        ),
        compiler_params=pltpu.CompilerParams(
            dimension_semantics=("parallel",)),
    )(packed)


def unpack_pose_table(table_packed, num_cams):
    """(16, S, 128) packed table -> (num_cams, 4, 4)."""
    s_total, lane = table_packed.shape[1:]
    flat = table_packed.reshape(16, s_total * lane)[:, :num_cams]
    return flat.T.reshape(num_cams, 4, 4)


def learn_pose_table(r, t, init_c2w=None, *, cam_tile=8192):
    """Full pose table: c2w(r[c], t[c]) @ init_c2w[c] for every camera."""
    packed, num_cams = pack_pose_inputs(r, t, init_c2w)
    return unpack_pose_table(pose_table_packed(packed, cam_tile=cam_tile),
                             num_cams)


def learn_pose_forward(cam_id, r, t, init_c2w=None, *, table_packed=None):
    """LearnPose.forward(cam_id): one (4,4) pose.

    Pass a cached `table_packed` (recomputed once per training step) to avoid
    re-running the kernel for every camera query; the select is a 16-float
    column gather, no full-table transpose.
    """
    # TODO(synk): in a full pipeline, fuse the pose math directly into the
    # ray-generation / point-transform consumer instead of writing poses to HBM.
    if table_packed is None:
        packed, _ = pack_pose_inputs(r, t, init_c2w)
        table_packed = pose_table_packed(packed)
    cam_id = int(cam_id)
    return table_packed[:, cam_id // LANE, cam_id % LANE].reshape(4, 4)


def _forward_ref(cam_id, r, t, init_c2w):
    """Pure-JAX reference mirroring the PyTorch make_c2w path."""
    rv = r[cam_id]
    tv = t[cam_id]
    theta = jnp.linalg.norm(rv) + 1e-15
    K = jnp.array([[0.0, -rv[2], rv[1]],
                   [rv[2], 0.0, -rv[0]],
                   [-rv[1], rv[0], 0.0]], dtype=jnp.float32)
    R = (jnp.eye(3, dtype=jnp.float32)
         + (jnp.sin(theta) / theta) * K
         + ((1.0 - jnp.cos(theta)) / (theta ** 2)) * (K @ K))
    c2w = jnp.concatenate([R, tv[:, None]], axis=1)
    c2w = jnp.concatenate(
        [c2w, jnp.array([[0.0, 0.0, 0.0, 1.0]], dtype=jnp.float32)], axis=0)
    return c2w @ init_c2w[cam_id]


if __name__ == "__main__":
    num_cams = 8
    cam_id = 3

    key = jax.random.PRNGKey(0)
    k1, k2, k3 = jax.random.split(key, 3)
    # The module inits r/t to zeros (identity rotation); use small non-zero
    # values so the Rodrigues math is actually exercised.
    r = 0.1 * jax.random.normal(k1, (num_cams, 3), dtype=jnp.float32)
    t = jax.random.normal(k2, (num_cams, 3), dtype=jnp.float32)
    init_c2w = jax.random.normal(k3, (num_cams, 4, 4), dtype=jnp.float32)

    # One-time packing (module init), per-step kernel call, one camera select.
    packed, n = pack_pose_inputs(r, t, init_c2w)
    table_packed = jax.block_until_ready(pose_table_packed(packed))

    table = unpack_pose_table(table_packed, n)
    ref_all = jnp.stack([_forward_ref(c, r, t, init_c2w) for c in range(num_cams)])
    assert table.shape == (num_cams, 4, 4) and table.dtype == jnp.float32
    assert jnp.allclose(table, ref_all, atol=1e-5, rtol=1e-5), (table, ref_all)

    # Module-style single-camera forward (column gather from the cached table).
    single = learn_pose_forward(cam_id, r, t, init_c2w, table_packed=table_packed)
    single = jax.block_until_ready(single)
    assert single.shape == (4, 4)
    assert jnp.allclose(single, ref_all[cam_id], atol=1e-5, rtol=1e-5), (
        single, ref_all[cam_id])

    # Convenience end-to-end path too.
    table2 = jax.block_until_ready(learn_pose_table(r, t, init_c2w))
    assert jnp.allclose(table2, ref_all, atol=1e-5, rtol=1e-5)

    print("KERNEL_OK")
</pallas_src>

<mosaic_0001>
module attributes {stable_mosaic.version = 11 : i64} {
  func.func @_pose_table_kernel(%arg0: i32, %arg1: memref<22x8x128xf32, #tpu.memory_space<vmem>>, %arg2: memref<16x8x128xf32, #tpu.memory_space<vmem>>) attributes {dimension_semantics = [#tpu.dimension_semantics<parallel>], iteration_bounds = array<i64: 1>, scalar_prefetch = 0 : i64, scratch_operands = 0 : i64, tpu.core_type = #tpu.core_type<tc>, window_params = [{transform_indices = @transform_0, window_bounds = array<i64: 22, 8, 128>}, {transform_indices = @transform_1, window_bounds = array<i64: 16, 8, 128>}]} {
    %c0 = arith.constant 0 : index
    %c0_0 = arith.constant 0 : index
    %c0_1 = arith.constant 0 : index
    %0 = vector.load %arg1[%c0, %c0_0, %c0_1] : memref<22x8x128xf32, #tpu.memory_space<vmem>>, vector<1x8x128xf32>
    %1 = vector.shape_cast %0 : vector<1x8x128xf32> to vector<8x128xf32>
    %c1 = arith.constant 1 : index
    %c0_2 = arith.constant 0 : index
    %c0_3 = arith.constant 0 : index
    %2 = vector.load %arg1[%c1, %c0_2, %c0_3] : memref<22x8x128xf32, #tpu.memory_space<vmem>>, vector<1x8x128xf32>
    %3 = vector.shape_cast %2 : vector<1x8x128xf32> to vector<8x128xf32>
    %c2 = arith.constant 2 : index
    %c0_4 = arith.constant 0 : index
    %c0_5 = arith.constant 0 : index
    %4 = vector.load %arg1[%c2, %c0_4, %c0_5] : memref<22x8x128xf32, #tpu.memory_space<vmem>>, vector<1x8x128xf32>
    %5 = vector.shape_cast %4 : vector<1x8x128xf32> to vector<8x128xf32>
    %c3 = arith.constant 3 : index
    %c0_6 = arith.constant 0 : index
    %c0_7 = arith.constant 0 : index
    %6 = vector.load %arg1[%c3, %c0_6, %c0_7] : memref<22x8x128xf32, #tpu.memory_space<vmem>>, vector<1x8x128xf32>
    %7 = vector.shape_cast %6 : vector<1x8x128xf32> to vector<8x128xf32>
    %c4 = arith.constant 4 : index
    %c0_8 = arith.constant 0 : index
    %c0_9 = arith.constant 0 : index
    %8 = vector.load %arg1[%c4, %c0_8, %c0_9] : memref<22x8x128xf32, #tpu.memory_space<vmem>>, vector<1x8x128xf32>
    %9 = vector.shape_cast %8 : vector<1x8x128xf32> to vector<8x128xf32>
    %c5 = arith.constant 5 : index
    %c0_10 = arith.constant 0 : index
    %c0_11 = arith.constant 0 : index
    %10 = vector.load %arg1[%c5, %c0_10, %c0_11] : memref<22x8x128xf32, #tpu.memory_space<vmem>>, vector<1x8x128xf32>
    %11 = vector.shape_cast %10 : vector<1x8x128xf32> to vector<8x128xf32>
    %12 = arith.mulf %1, %1 : vector<8x128xf32>
    %13 = arith.mulf %3, %3 : vector<8x128xf32>
    %14 = arith.addf %12, %13 : vector<8x128xf32>
    %15 = arith.mulf %5, %5 : vector<8x128xf32>
    %16 = arith.addf %14, %15 : vector<8x128xf32>
    %17 = math.sqrt %16 : vector<8x128xf32>
    %cst = arith.constant 1.000000e-15 : f32
    %18 = vector.broadcast %cst : f32 to vector<8x128xf32>
    %19 = arith.addf %17, %18 : vector<8x128xf32>
    %20 = tpu.reciprocal %19 {approx = true} : vector<8x128xf32> -> vector<8x128xf32>
    %21 = arith.mulf %19, %20 : vector<8x128xf32>
    %cst_12 = arith.constant 2.000000e+00 : f32
    %22 = vector.broadcast %cst_12 : f32 to vector<8x128xf32>
    %23 = arith.subf %22, %21 : vector<8x128xf32>
    %24 = arith.mulf %20, %23 : vector<8x128xf32>
    %25 = math.sin %19 : vector<8x128xf32>
    %26 = arith.mulf %25, %24 : vector<8x128xf32>
    %27 = math.cos %19 : vector<8x128xf32>
    %cst_13 = arith.constant 1.000000e+00 : f32
    %28 = vector.broadcast %cst_13 : f32 to vector<8x128xf32>
    %29 = arith.subf %28, %27 : vector<8x128xf32>
    %30 = arith.mulf %24, %24 : vector<8x128xf32>
    %31 = arith.mulf %29, %30 : vector<8x128xf32>
    %32 = arith.mulf %31, %1 : vector<8x128xf32>
    %33 = arith.mulf %31, %3 : vector<8x128xf32>
    %34 = arith.mulf %31, %5 : vector<8x128xf32>
    %35 = arith.mulf %26, %1 : vector<8x128xf32>
    %36 = arith.mulf %26, %3 : vector<8x128xf32>
    %37 = arith.mulf %26, %5 : vector<8x128xf32>
    %38 = arith.mulf %31, %16 : vector<8x128xf32>
    %cst_14 = arith.constant 1.000000e+00 : f32
    %39 = vector.broadcast %cst_14 : f32 to vector<8x128xf32>
    %40 = arith.subf %39, %38 : vector<8x128xf32>
    %41 = arith.mulf %32, %1 : vector<8x128xf32>
    %42 = arith.addf %40, %41 : vector<8x128xf32>
    %43 = arith.mulf %32, %3 : vector<8x128xf32>
    %44 = arith.subf %43, %37 : vector<8x128xf32>
    %45 = arith.mulf %32, %5 : vector<8x128xf32>
    %46 = arith.addf %45, %36 : vector<8x128xf32>
    %47 = arith.mulf %32, %3 : vector<8x128xf32>
    %48 = arith.addf %47, %37 : vector<8x128xf32>
    %49 = arith.mulf %33, %3 : vector<8x128xf32>
    %50 = arith.addf %40, %49 : vector<8x128xf32>
    %51 = arith.mulf %33, %5 : vector<8x128xf32>
    %52 = arith.subf %51, %35 : vector<8x128xf32>
    %53 = arith.mulf %32, %5 : vector<8x128xf32>
    %54 = arith.subf %53, %36 : vector<8x128xf32>
    %55 = arith.mulf %33, %5 : vector<8x128xf32>
    %56 = arith.addf %55, %35 : vector<8x128xf32>
    %57 = arith.mulf %34, %5 : vector<8x128xf32>
    %58 = arith.addf %40, %57 : vector<8x128xf32>
    %c6 = arith.constant 6 : index
    %c0_15 = arith.constant 0 : index
    %c0_16 = arith.constant 0 : index
    %59 = vector.load %arg1[%c6, %c0_15, %c0_16] : memref<22x8x128xf32, #tpu.memory_space<vmem>>, vector<1x8x128xf32>
    %60 = vector.shape_cast %59 : vector<1x8x128xf32> to vector<8x128xf32>
    %c7 = arith.constant 7 : index
    %c0_17 = arith.constant 0 : index
    %c0_18 = arith.constant 0 : index
    %61 = vector.load %arg1[%c7, %c0_17, %c0_18] : memref<22x8x128xf32, #tpu.memory_space<vmem>>, vector<1x8x128xf32>
    %62 = vector.shape_cast %61 : vector<1x8x128xf32> to vector<8x128xf32>
    %c8 = arith.constant 8 : index
    %c0_19 = arith.constant 0 : index
    %c0_20 = arith.constant 0 : index
    %63 = vector.load %arg1[%c8, %c0_19, %c0_20] : memref<22x8x128xf32, #tpu.memory_space<vmem>>, vector<1x8x128xf32>
    %64 = vector.shape_cast %63 : vector<1x8x128xf32> to vector<8x128xf32>
    %c9 = arith.constant 9 : index
    %c0_21 = arith.constant 0 : index
    %c0_22 = arith.constant 0 : index
    %65 = vector.load %arg1[%c9, %c0_21, %c0_22] : memref<22x8x128xf32, #tpu.memory_space<vmem>>, vector<1x8x128xf32>
    %66 = vector.shape_cast %65 : vector<1x8x128xf32> to vector<8x128xf32>
    %c10 = arith.constant 10 : index
    %c0_23 = arith.constant 0 : index
    %c0_24 = arith.constant 0 : index
    %67 = vector.load %arg1[%c10, %c0_23, %c0_24] : memref<22x8x128xf32, #tpu.memory_space<vmem>>, vector<1x8x128xf32>
    %68 = vector.shape_cast %67 : vector<1x8x128xf32> to vector<8x128xf32>
    %c11 = arith.constant 11 : index
    %c0_25 = arith.constant 0 : index
    %c0_26 = arith.constant 0 : index
    %69 = vector.load %arg1[%c11, %c0_25, %c0_26] : memref<22x8x128xf32, #tpu.memory_space<vmem>>, vector<1x8x128xf32>
    %70 = vector.shape_cast %69 : vector<1x8x128xf32> to vector<8x128xf32>
    %c12 = arith.constant 12 : index
    %c0_27 = arith.constant 0 : index
    %c0_28 = arith.constant 0 : index
    %71 = vector.load %arg1[%c12, %c0_27, %c0_28] : memref<22x8x128xf32, #tpu.memory_space<vmem>>, vector<1x8x128xf32>
    %72 = vector.shape_cast %71 : vector<1x8x128xf32> to vector<8x128xf32>
    %c13 = arith.constant 13 : index
    %c0_29 = arith.constant 0 : index
    %c0_30 = arith.constant 0 : index
    %73 = vector.load %arg1[%c13, %c0_29, %c0_30] : memref<22x8x128xf32, #tpu.memory_space<vmem>>, vector<1x8x128xf32>
    %74 = vector.shape_cast %73 : vector<1x8x128xf32> to vector<8x128xf32>
    %c14 = arith.constant 14 : index
    %c0_31 = arith.constant 0 : index
    %c0_32 = arith.constant 0 : index
    %75 = vector.load %arg1[%c14, %c0_31, %c0_32] : memref<22x8x128xf32, #tpu.memory_space<vmem>>, vector<1x8x128xf32>
    %76 = vector.shape_cast %75 : vector<1x8x128xf32> to vector<8x128xf32>
    %c15 = arith.constant 15 : index
    %c0_33 = arith.constant 0 : index
    %c0_34 = arith.constant 0 : index
    %77 = vector.load %arg1[%c15, %c0_33, %c0_34] : memref<22x8x128xf32, #tpu.memory_space<vmem>>, vector<1x8x128xf32>
    %78 = vector.shape_cast %77 : vector<1x8x128xf32> to vector<8x128xf32>
    %c16 = arith.constant 16 : index
    %c0_35 = arith.constant 0 : index
    %c0_36 = arith.constant 0 : index
    %79 = vector.load %arg1[%c16, %c0_35, %c0_36] : memref<22x8x128xf32, #tpu.memory_space<vmem>>, vector<1x8x128xf32>
    %80 = vector.shape_cast %79 : vector<1x8x128xf32> to vector<8x128xf32>
    %c17 = arith.constant 17 : index
    %c0_37 = arith.constant 0 : index
    %c0_38 = arith.constant 0 : index
    %81 = vector.load %arg1[%c17, %c0_37, %c0_38] : memref<22x8x128xf32, #tpu.memory_space<vmem>>, vector<1x8x128xf32>
    %82 = vector.shape_cast %81 : vector<1x8x128xf32> to vector<8x128xf32>
    %c18 = arith.constant 18 : index
    %c0_39 = arith.constant 0 : index
    %c0_40 = arith.constant 0 : index
    %83 = vector.load %arg1[%c18, %c0_39, %c0_40] : memref<22x8x128xf32, #tpu.memory_space<vmem>>, vector<1x8x128xf32>
    %84 = vector.shape_cast %83 : vector<1x8x128xf32> to vector<8x128xf32>
    %c19 = arith.constant 19 : index
    %c0_41 = arith.constant 0 : index
    %c0_42 = arith.constant 0 : index
    %85 = vector.load %arg1[%c19, %c0_41, %c0_42] : memref<22x8x128xf32, #tpu.memory_space<vmem>>, vector<1x8x128xf32>
    %86 = vector.shape_cast %85 : vector<1x8x128xf32> to vector<8x128xf32>
    %c20 = arith.constant 20 : index
    %c0_43 = arith.constant 0 : index
    %c0_44 = arith.constant 0 : index
    %87 = vector.load %arg1[%c20, %c0_43, %c0_44] : memref<22x8x128xf32, #tpu.memory_space<vmem>>, vector<1x8x128xf32>
    %88 = vector.shape_cast %87 : vector<1x8x128xf32> to vector<8x128xf32>
    %c21 = arith.constant 21 : index
    %c0_45 = arith.constant 0 : index
    %c0_46 = arith.constant 0 : index
    %89 = vector.load %arg1[%c21, %c0_45, %c0_46] : memref<22x8x128xf32, #tpu.memory_space<vmem>>, vector<1x8x128xf32>
    %90 = vector.shape_cast %89 : vector<1x8x128xf32> to vector<8x128xf32>
    %91 = arith.mulf %42, %60 : vector<8x128xf32>
    %92 = arith.mulf %44, %68 : vector<8x128xf32>
    %93 = arith.addf %91, %92 : vector<8x128xf32>
    %94 = arith.mulf %46, %76 : vector<8x128xf32>
    %95 = arith.addf %93, %94 : vector<8x128xf32>
    %96 = arith.mulf %7, %84 : vector<8x128xf32>
    %97 = arith.addf %95, %96 : vector<8x128xf32>
    %c0_47 = arith.constant 0 : index
    %c0_48 = arith.constant 0 : index
    %c0_49 = arith.constant 0 : index
    %98 = vector.load %arg2[%c0_47, %c0_48, %c0_49] : memref<16x8x128xf32, #tpu.memory_space<vmem>>, vector<1x8x128xf32>
    %99 = vector.shape_cast %98 : vector<1x8x128xf32> to vector<8x128xf32>
    %100 = vector.shape_cast %97 : vector<8x128xf32> to vector<1x8x128xf32>
    tpu.vector_store %arg2[%c0_47, %c0_48, %c0_49], %100 {strides = array<i32>} : memref<16x8x128xf32, #tpu.memory_space<vmem>>, vector<1x8x128xf32>,
    %101 = arith.mulf %42, %62 : vector<8x128xf32>
    %102 = arith.mulf %44, %70 : vector<8x128xf32>
    %103 = arith.addf %101, %102 : vector<8x128xf32>
    %104 = arith.mulf %46, %78 : vector<8x128xf32>
    %105 = arith.addf %103, %104 : vector<8x128xf32>
    %106 = arith.mulf %7, %86 : vector<8x128xf32>
    %107 = arith.addf %105, %106 : vector<8x128xf32>
    %c1_50 = arith.constant 1 : index
    %c0_51 = arith.constant 0 : index
    %c0_52 = arith.constant 0 : index
    %108 = vector.load %arg2[%c1_50, %c0_51, %c0_52] : memref<16x8x128xf32, #tpu.memory_space<vmem>>, vector<1x8x128xf32>
    %109 = vector.shape_cast %108 : vector<1x8x128xf32> to vector<8x128xf32>
    %110 = vector.shape_cast %107 : vector<8x128xf32> to vector<1x8x128xf32>
    tpu.vector_store %arg2[%c1_50, %c0_51, %c0_52], %110 {strides = array<i32>} : memref<16x8x128xf32, #tpu.memory_space<vmem>>, vector<1x8x128xf32>,
    %111 = arith.mulf %42, %64 : vector<8x128xf32>
    %112 = arith.mulf %44, %72 : vector<8x128xf32>
    %113 = arith.addf %111, %112 : vector<8x128xf32>
    %114 = arith.mulf %46, %80 : vector<8x128xf32>
    %115 = arith.addf %113, %114 : vector<8x128xf32>
    %116 = arith.mulf %7, %88 : vector<8x128xf32>
    %117 = arith.addf %115, %116 : vector<8x128xf32>
    %c2_53 = arith.constant 2 : index
    %c0_54 = arith.constant 0 : index
    %c0_55 = arith.constant 0 : index
    %118 = vector.load %arg2[%c2_53, %c0_54, %c0_55] : memref<16x8x128xf32, #tpu.memory_space<vmem>>, vector<1x8x128xf32>
    %119 = vector.shape_cast %118 : vector<1x8x128xf32> to vector<8x128xf32>
    %120 = vector.shape_cast %117 : vector<8x128xf32> to vector<1x8x128xf32>
    tpu.vector_store %arg2[%c2_53, %c0_54, %c0_55], %120 {strides = array<i32>} : memref<16x8x128xf32, #tpu.memory_space<vmem>>, vector<1x8x128xf32>,
    %121 = arith.mulf %42, %66 : vector<8x128xf32>
    %122 = arith.mulf %44, %74 : vector<8x128xf32>
    %123 = arith.addf %121, %122 : vector<8x128xf32>
    %124 = arith.mulf %46, %82 : vector<8x128xf32>
    %125 = arith.addf %123, %124 : vector<8x128xf32>
    %126 = arith.mulf %7, %90 : vector<8x128xf32>
    %127 = arith.addf %125, %126 : vector<8x128xf32>
    %c3_56 = arith.constant 3 : index
    %c0_57 = arith.constant 0 : index
    %c0_58 = arith.constant 0 : index
    %128 = vector.load %arg2[%c3_56, %c0_57, %c0_58] : memref<16x8x128xf32, #tpu.memory_space<vmem>>, vector<1x8x128xf32>
    %129 = vector.shape_cast %128 : vector<1x8x128xf32> to vector<8x128xf32>
    %130 = vector.shape_cast %127 : vector<8x128xf32> to vector<1x8x128xf32>
    tpu.vector_store %arg2[%c3_56, %c0_57, %c0_58], %130 {strides = array<i32>} : memref<16x8x128xf32, #tpu.memory_space<vmem>>, vector<1x8x128xf32>,
    %131 = arith.mulf %48, %60 : vector<8x128xf32>
    %132 = arith.mulf %50, %68 : vector<8x128xf32>
    %133 = arith.addf %131, %132 : vector<8x128xf32>
    %134 = arith.mulf %52, %76 : vector<8x128xf32>
    %135 = arith.addf %133, %134 : vector<8x128xf32>
    %136 = arith.mulf %9, %84 : vector<8x128xf32>
    %137 = arith.addf %135, %136 : vector<8x128xf32>
    %c4_59 = arith.constant 4 : index
    %c0_60 = arith.constant 0 : index
    %c0_61 = arith.constant 0 : index
    %138 = vector.load %arg2[%c4_59, %c0_60, %c0_61] : memref<16x8x128xf32, #tpu.memory_space<vmem>>, vector<1x8x128xf32>
    %139 = vector.shape_cast %138 : vector<1x8x128xf32> to vector<8x128xf32>
    %140 = vector.shape_cast %137 : vector<8x128xf32> to vector<1x8x128xf32>
    tpu.vector_store %arg2[%c4_59, %c0_60, %c0_61], %140 {strides = array<i32>} : memref<16x8x128xf32, #tpu.memory_space<vmem>>, vector<1x8x128xf32>,
    %141 = arith.mulf %48, %62 : vector<8x128xf32>
    %142 = arith.mulf %50, %70 : vector<8x128xf32>
    %143 = arith.addf %141, %142 : vector<8x128xf32>
    %144 = arith.mulf %52, %78 : vector<8x128xf32>
    %145 = arith.addf %143, %144 : vector<8x128xf32>
    %146 = arith.mulf %9, %86 : vector<8x128xf32>
    %147 = arith.addf %145, %146 : vector<8x128xf32>
    %c5_62 = arith.constant 5 : index
    %c0_63 = arith.constant 0 : index
    %c0_64 = arith.constant 0 : index
    %148 = vector.load %arg2[%c5_62, %c0_63, %c0_64] : memref<16x8x128xf32, #tpu.memory_space<vmem>>, vector<1x8x128xf32>
    %149 = vector.shape_cast %148 : vector<1x8x128xf32> to vector<8x128xf32>
    %150 = vector.shape_cast %147 : vector<8x128xf32> to vector<1x8x128xf32>
    tpu.vector_store %arg2[%c5_62, %c0_63, %c0_64], %150 {strides = array<i32>} : memref<16x8x128xf32, #tpu.memory_space<vmem>>, vector<1x8x128xf32>,
    %151 = arith.mulf %48, %64 : vector<8x128xf32>
    %152 = arith.mulf %50, %72 : vector<8x128xf32>
    %153 = arith.addf %151, %152 : vector<8x128xf32>
    %154 = arith.mulf %52, %80 : vector<8x128xf32>
    %155 = arith.addf %153, %154 : vector<8x128xf32>
    %156 = arith.mulf %9, %88 : vector<8x128xf32>
    %157 = arith.addf %155, %156 : vector<8x128xf32>
    %c6_65 = arith.constant 6 : index
    %c0_66 = arith.constant 0 : index
    %c0_67 = arith.constant 0 : index
    %158 = vector.load %arg2[%c6_65, %c0_66, %c0_67] : memref<16x8x128xf32, #tpu.memory_space<vmem>>, vector<1x8x128xf32>
    %159 = vector.shape_cast %158 : vector<1x8x128xf32> to vector<8x128xf32>
    %160 = vector.shape_cast %157 : vector<8x128xf32> to vector<1x8x128xf32>
    tpu.vector_store %arg2[%c6_65, %c0_66, %c0_67], %160 {strides = array<i32>} : memref<16x8x128xf32, #tpu.memory_space<vmem>>, vector<1x8x128xf32>,
    %161 = arith.mulf %48, %66 : vector<8x128xf32>
    %162 = arith.mulf %50, %74 : vector<8x128xf32>
    %163 = arith.addf %161, %162 : vector<8x128xf32>
    %164 = arith.mulf %52, %82 : vector<8x128xf32>
    %165 = arith.addf %163, %164 : vector<8x128xf32>
    %166 = arith.mulf %9, %90 : vector<8x128xf32>
    %167 = arith.addf %165, %166 : vector<8x128xf32>
    %c7_68 = arith.constant 7 : index
    %c0_69 = arith.constant 0 : index
    %c0_70 = arith.constant 0 : index
    %168 = vector.load %arg2[%c7_68, %c0_69, %c0_70] : memref<16x8x128xf32, #tpu.memory_space<vmem>>, vector<1x8x128xf32>
    %169 = vector.shape_cast %168 : vector<1x8x128xf32> to vector<8x128xf32>
    %170 = vector.shape_cast %167 : vector<8x128xf32> to vector<1x8x128xf32>
    tpu.vector_store %arg2[%c7_68, %c0_69, %c0_70], %170 {strides = array<i32>} : memref<16x8x128xf32, #tpu.memory_space<vmem>>, vector<1x8x128xf32>,
    %171 = arith.mulf %54, %60 : vector<8x128xf32>
    %172 = arith.mulf %56, %68 : vector<8x128xf32>
    %173 = arith.addf %171, %172 : vector<8x128xf32>
    %174 = arith.mulf %58, %76 : vector<8x128xf32>
    %175 = arith.addf %173, %174 : vector<8x128xf32>
    %176 = arith.mulf %11, %84 : vector<8x128xf32>
    %177 = arith.addf %175, %176 : vector<8x128xf32>
    %c8_71 = arith.constant 8 : index
    %c0_72 = arith.constant 0 : index
    %c0_73 = arith.constant 0 : index
    %178 = vector.load %arg2[%c8_71, %c0_72, %c0_73] : memref<16x8x128xf32, #tpu.memory_space<vmem>>, vector<1x8x128xf32>
    %179 = vector.shape_cast %178 : vector<1x8x128xf32> to vector<8x128xf32>
    %180 = vector.shape_cast %177 : vector<8x128xf32> to vector<1x8x128xf32>
    tpu.vector_store %arg2[%c8_71, %c0_72, %c0_73], %180 {strides = array<i32>} : memref<16x8x128xf32, #tpu.memory_space<vmem>>, vector<1x8x128xf32>,
    %181 = arith.mulf %54, %62 : vector<8x128xf32>
    %182 = arith.mulf %56, %70 : vector<8x128xf32>
    %183 = arith.addf %181, %182 : vector<8x128xf32>
    %184 = arith.mulf %58, %78 : vector<8x128xf32>
    %185 = arith.addf %183, %184 : vector<8x128xf32>
    %186 = arith.mulf %11, %86 : vector<8x128xf32>
    %187 = arith.addf %185, %186 : vector<8x128xf32>
    %c9_74 = arith.constant 9 : index
    %c0_75 = arith.constant 0 : index
    %c0_76 = arith.constant 0 : index
    %188 = vector.load %arg2[%c9_74, %c0_75, %c0_76] : memref<16x8x128xf32, #tpu.memory_space<vmem>>, vector<1x8x128xf32>
    %189 = vector.shape_cast %188 : vector<1x8x128xf32> to vector<8x128xf32>
    %190 = vector.shape_cast %187 : vector<8x128xf32> to vector<1x8x128xf32>
    tpu.vector_store %arg2[%c9_74, %c0_75, %c0_76], %190 {strides = array<i32>} : memref<16x8x128xf32, #tpu.memory_space<vmem>>, vector<1x8x128xf32>,
    %191 = arith.mulf %54, %64 : vector<8x128xf32>
    %192 = arith.mulf %56, %72 : vector<8x128xf32>
    %193 = arith.addf %191, %192 : vector<8x128xf32>
    %194 = arith.mulf %58, %80 : vector<8x128xf32>
    %195 = arith.addf %193, %194 : vector<8x128xf32>
    %196 = arith.mulf %11, %88 : vector<8x128xf32>
    %197 = arith.addf %195, %196 : vector<8x128xf32>
    %c10_77 = arith.constant 10 : index
    %c0_78 = arith.constant 0 : index
    %c0_79 = arith.constant 0 : index
    %198 = vector.load %arg2[%c10_77, %c0_78, %c0_79] : memref<16x8x128xf32, #tpu.memory_space<vmem>>, vector<1x8x128xf32>
    %199 = vector.shape_cast %198 : vector<1x8x128xf32> to vector<8x128xf32>
    %200 = vector.shape_cast %197 : vector<8x128xf32> to vector<1x8x128xf32>
    tpu.vector_store %arg2[%c10_77, %c0_78, %c0_79], %200 {strides = array<i32>} : memref<16x8x128xf32, #tpu.memory_space<vmem>>, vector<1x8x128xf32>,
    %201 = arith.mulf %54, %66 : vector<8x128xf32>
    %202 = arith.mulf %56, %74 : vector<8x128xf32>
    %203 = arith.addf %201, %202 : vector<8x128xf32>
    %204 = arith.mulf %58, %82 : vector<8x128xf32>
    %205 = arith.addf %203, %204 : vector<8x128xf32>
    %206 = arith.mulf %11, %90 : vector<8x128xf32>
    %207 = arith.addf %205, %206 : vector<8x128xf32>
    %c11_80 = arith.constant 11 : index
    %c0_81 = arith.constant 0 : index
    %c0_82 = arith.constant 0 : index
    %208 = vector.load %arg2[%c11_80, %c0_81, %c0_82] : memref<16x8x128xf32, #tpu.memory_space<vmem>>, vector<1x8x128xf32>
    %209 = vector.shape_cast %208 : vector<1x8x128xf32> to vector<8x128xf32>
    %210 = vector.shape_cast %207 : vector<8x128xf32> to vector<1x8x128xf32>
    tpu.vector_store %arg2[%c11_80, %c0_81, %c0_82], %210 {strides = array<i32>} : memref<16x8x128xf32, #tpu.memory_space<vmem>>, vector<1x8x128xf32>,
    %c18_83 = arith.constant 18 : index
    %c0_84 = arith.constant 0 : index
    %c0_85 = arith.constant 0 : index
    %211 = vector.load %arg1[%c18_83, %c0_84, %c0_85] : memref<22x8x128xf32, #tpu.memory_space<vmem>>, vector<4x8x128xf32>
    %c12_86 = arith.constant 12 : index
    %c0_87 = arith.constant 0 : index
    %c0_88 = arith.constant 0 : index
    %212 = vector.load %arg2[%c12_86, %c0_87, %c0_88] : memref<16x8x128xf32, #tpu.memory_space<vmem>>, vector<4x8x128xf32>
    tpu.vector_store %arg2[%c12_86, %c0_87, %c0_88], %211 {strides = array<i32>} : memref<16x8x128xf32, #tpu.memory_space<vmem>>, vector<4x8x128xf32>,
    return
  }
  func.func @transform_0(%arg0: i32) -> (i32, i32, i32) {
    %c0_i32 = arith.constant 0 : i32
    %c0_i32_0 = arith.constant 0 : i32
    %c0_i32_1 = arith.constant 0 : i32
    return %c0_i32, %arg0, %c0_i32_0 : i32, i32, i32
  }
  func.func @transform_1(%arg0: i32) -> (i32, i32, i32) {
    %c0_i32 = arith.constant 0 : i32
    %c0_i32_0 = arith.constant 0 : i32
    %c0_i32_1 = arith.constant 0 : i32
    return %c0_i32, %arg0, %c0_i32_0 : i32, i32, i32
  }
}

</mosaic_0001>

<llo_original>
// kernel: tpu_custom_call.1
$region0: #{tpu_custom_call.1}
  #allocation0 [shape = 'u32[]', space=smem, size = 0x4, offset = 0x4, fixed_abs, tag = 'smem constant byte address 0x4 - core index']
  #allocation1 [shape = 'u32[72,128]{1,0:T(1,128)}', space=vmem, size = 0x9000, scoped, tag = 'internal scratch']
  %s0 = inlined_call_operand.hbm [shape: f32[22,8,128], index: 0, kind: input, shape index: {}]
  %s1 = inlined_call_operand.hbm [shape: f32[16,8,128], index: 1, kind: output, shape index: {}]
  %s2 = sld [smem:[#allocation0]]
  $region18: #{tpu_custom_call.1} parent=0
    _
  %s4 = ssub.s32 1, %s2
  %s5 = scalar_select 0, %s4, %s2
  $region1: #{tpu_custom_call.1} parent=0
    #allocation2 [shape = 'u8[90112]{0}', space=vmem, size = 0x16000, scoped, tag = 'input window, operand 0, single buffered']
    #allocation3 [shape = 's32[1]{0}', space=sflag, size = 0x4, scoped, tag = 'scoped memory for tpu_custom_call.1']
    #allocation4 [shape = 's32[1]{0}', space=sflag, size = 0x4, scoped, tag = 'scoped memory for tpu_custom_call.1']
    #allocation5 [shape = 'u8[65536]{0}', space=vmem, size = 0x10000, scoped, tag = 'output window, operand 0, single buffered']
    %6 = vsyncpa [#allocation3], 0
    %7 = vsyncpa [#allocation4], 0
    // Predicated region
    $region2: #{tpu_custom_call.1} parent=1 // pred_check
      _
    $region3: #{tpu_custom_call.1} parent=1 // pred_check_branch
      %9 = sbr.rel (0) target = $region5
    $region4: #{tpu_custom_call.1} parent=1 // pred_region
      %11 = vsyncadd [#allocation3], 0
      %s12 = sshll.u32 %s0, 4
      %s13 = int_to_ptr.hbm [resolvable:$true] %s12
      %s14 = sshll.u32 [#allocation2], 4
      %s15 = int_to_ptr.vmem [resolvable:$true] %s14
      %20 = dma.hbm_to_vmem [thread:$0]  %s13, 2816, %s15, [#allocation3], 128, 128, 8
    $region5: #{tpu_custom_call.1} parent=1 // pred_fallthru
      _
    // Predicated region
    $region6: #{tpu_custom_call.1} parent=1 // pred_check
      _
    $region7: #{tpu_custom_call.1} parent=1 // pred_check_branch
      %22 = sbr.rel (0) target = $region9
    $region8: #{tpu_custom_call.1} parent=1 // pred_region
      %24 = dma.done [#allocation3], 2816
    $region9: #{tpu_custom_call.1} parent=1 // pred_fallthru
      _
    %v25 = vld [vmem:[#allocation2] sm:$0xff]
    %s26 = scalar_lea.vmem [#allocation2], 8
    %v27 = vld [vmem:[%s26] sm:$0xff]
    %s28 = scalar_lea.vmem [#allocation2], 16
    %v29 = vld [vmem:[%s28] sm:$0xff]
    %s30 = scalar_lea.vmem [#allocation2], 24
    %v31 = vld [vmem:[%s30] sm:$0xff]
    %s32 = scalar_lea.vmem [#allocation2], 32
    %v33 = vld [vmem:[%s32] sm:$0xff]
    %s34 = scalar_lea.vmem [#allocation2], 40
    %v35 = vld [vmem:[%s34] sm:$0xff]
    %v36 = vmul.f32 %v25, %v25
    %v37 = vmul.f32 %v27, %v27
    %v38 = vadd.f32 %v36, %v37
    %v39 = vmul.f32 %v29, %v29
    %v40 = vadd.f32 %v38, %v39
    %v41 = vrsqrt.pop %v40
    %v42 = vmul.f32 %v41, %v40
    %v43 = vmul.f32 %v42, %v41
    %v44 = vmul.f32 0.5, %v43
    %v45 = vsub.f32 1.5, %v44
    %v46 = vmul.f32 %v41, %v45
    %v47 = vmul.f32 %v40, %v46
    %vm48 = vcmp.eq.f32.partialorder %v40, inf
    %v49 = vsel %vm48, %v40, %v47
    %vm50 = vcmp.eq.f32.partialorder %v40, 0.0
    %v51 = vand.u32 %v40, 2147483648
    %v52 = vsel %vm50, %v51, %v49
    %v53 = vadd.f32 %v52, 1e-15
    %v54 = vrcp.pop %v53
    %v55 = vmul.f32 %v53, %v54
    %v56 = vsub.f32 2.0, %v55
    %v57 = vmul.f32 %v54, %v56
    %v58 = vand.u32 2147483647, %v53
    %vm59 = vcmp.le.f32.partialorder %v58, 0.7853982
    %vm60 = vcmp.lt.s32.totalorder %v53, 0
    %v61 = vand.u32 %v53, 2139095040
    %v62 = vshrl.u32 %v61, 23
    %v63 = vsub.s32 %v62, 127
    %v64 = vand.u32 2147483647, %v53
    %v65 = vand.u32 %v64, 8388607
    %v66 = vor.u32 %v65, 8388608
    %v67 = vsub.s32 0, %v66
    %v68 = vadd.s32 %v63, 1
    %vm69 = vcmp.gt.s32.totalorder %v68, 0
    %v70 = vsel %vm69, %v68, 0
    %v71 = vshrl.u32 %v70, 5
    %v72 = vand.u32 %v70, 31
    %v73 = vsub.s32 32, %v72
    %v74 = vshrl.u32 683565275, %v73
    %v75 = vshll.u32 683565275, %v72
    %v76 = vshrl.u32 2475754826, %v73
    %v77 = vor.u32 %v75, %v76
    %v78 = vshll.u32 2475754826, %v72
    %v79 = vshrl.u32 2131351028, %v73
    %v80 = vor.u32 %v78, %v79
    %v81 = vshll.u32 2131351028, %v72
    %v82 = vshrl.u32 2102212464, %v73
    %v83 = vor.u32 %v81, %v82
    %v84 = vshll.u32 2102212464, %v72
    %v85 = vshrl.u32 920167782, %v73
    %v86 = vor.u32 %v84, %v85
    %v87 = vshll.u32 920167782, %v72
    %v88 = vshrl.u32 1326507024, %v73
    %v89 = vor.u32 %v87, %v88
    %vm90 = vcmp.lt.s32.totalorder %v71, 1
    %vm91 = vcmp.lt.s32.totalorder %v71, 2
    %vm92 = vcmp.lt.s32.totalorder %v71, 3
    %vm93 = vcmp.lt.s32.totalorder %v71, 4
    %v94 = vsel %vm90, %v74, %v77
    %v95 = vsel %vm93, %v83, 2102212464
    %v96 = vsel %vm92, %v80, %v95
    %v97 = vsel %vm91, %v94, %v96
    %v98 = vsel %vm90, %v77, %v80
    %v99 = vsel %vm93, %v86, 920167782
    %v100 = vsel %vm92, %v83, %v99
    %v101 = vsel %vm91, %v98, %v100
    %v102 = vsel %vm90, %v80, %v83
    %v103 = vsel %vm93, %v89, 1326507024
    %v104 = vsel %vm92, %v86, %v103
    %v105 = vsel %vm91, %v102, %v104
    %v106 = vshll.u32 %v66, 8
    %v107 = vand.u32 %v106, 65535
    %v108 = vshrl.u32 %v106, 16
    %v109 = vand.u32 %v105, 65535
    %v110 = vshrl.u32 %v105, 16
    %v111 = vmul.u32 %v107, %v109
    %v112 = vmul.u32 %v107, %v110
    %v113 = vmul.u32 %v108, %v109
    %v114 = vmul.u32 %v108, %v110
    %v115 = vshll.u32 %v112, 16
    %v116 = vshrl.u32 %v112, 16
    %v117 = vshll.u32 %v113, 16
    %v118 = vshrl.u32 %v113, 16
    %vm119 = vc.u32 %v111, %v115
    %v120 = vsel %vm119, 1, 0
    %v121 = vadd.s32 %v111, %v115
    %v122 = vadd.s32 %v114, %v120
    %vm123 = vc.u32 %v121, %v117
    %v124 = vsel %vm123, 1, 0
    %v125 = vadd.s32 %v121, %v117
    %v126 = vadd.s32 %v122, %v124
    %v127 = vadd.s32 %v126, %v116
    %v128 = vadd.s32 %v127, %v118
    %v129 = vand.u32 %v106, 65535
    %v130 = vshrl.u32 %v106, 16
    %v131 = vand.u32 %v101, 65535
    %v132 = vshrl.u32 %v101, 16
    %v133 = vmul.u32 %v129, %v131
    %v134 = vmul.u32 %v129, %v132
    %v135 = vmul.u32 %v130, %v131
    %v136 = vmul.u32 %v130, %v132
    %v137 = vshll.u32 %v134, 16
    %v138 = vshrl.u32 %v134, 16
    %v139 = vshll.u32 %v135, 16
    %v140 = vshrl.u32 %v135, 16
    %vm141 = vc.u32 %v133, %v137
    %v142 = vsel %vm141, 1, 0
    %v143 = vadd.s32 %v133, %v137
    %v144 = vadd.s32 %v136, %v142
    %vm145 = vc.u32 %v143, %v139
    %v146 = vsel %vm145, 1, 0
    %v147 = vadd.s32 %v143, %v139
    %v148 = vadd.s32 %v144, %v146
    %v149 = vadd.s32 %v148, %v138
    %v150 = vadd.s32 %v149, %v140
    %v151 = vmul.u32 %v106, %v97
    %v152 = vadd.s32 %v128, %v147
    %vm153 = vc.u32 %v128, %v147
    %v154 = vadd.s32 %v150, 1
    %v155 = vsel %vm153, %v154, %v150
    %v156 = vadd.s32 %v151, %v155
    %v157 = vadd.s32 %v156, 536870912
    %v158 = vshrl.u32 %v157, 30
    %v159 = vshll.u32 %v158, 30
    %v160 = vsub.s32 %v156, %v159
    %vm161 = vcmp.lt.s32.totalorder %v160, 0
    %v162 = vsub.s32 0, %v160
    %v163 = vsel %vm161, %v162, %v160
    %v164 = vclz %v163
    %v165 = vsub.s32 %v164, 2
    %vm166 = vcmp.gt.s32.totalorder 0, %v165
    %v167 = vsel %vm166, 0, %v165
    %v168 = vsub.s32 32, %v167
    %v169 = vshll.u32 %v160, %v167
    %v170 = vshrl.u32 %v152, %v168
    %v171 = vor.u32 %v169, %v170
    %v172 = vsub.s32 4294967266, %v167
    %v173 = vadd.s32 %v172, 127
    %v174 = vshll.u32 %v173, 23
    %v175 = vor.u32 4788187, %v174
    %v176 = vand.u32 2147483647, %v175
    %v178 = vcvt.s32.f32 %v171
    %v179 = vmul.f32 %v178, %v176
    %v180 = vxor.u32 %v179, 2147483648
    %v181 = vsel %vm60, %v180, %v179
    %v182 = vsub.s32 4, %v158
    %v183 = vsel %vm60, %v182, %v158
    %v184 = vsel %vm59, %v53, %v181
    %v185 = vsel %vm59, 0, %v183
    %v186 = vmul.f32 %v184, %v184
    %v187 = vmul.f32 %v186, -0.001358992
    %v188 = vadd.f32 %v187, 0.041655596
    %v189 = vmul.f32 %v186, %v188
    %v190 = vadd.f32 %v189, -0.4999988
    %v191 = vmul.f32 %v186, %v190
    %v192 = vadd.f32 1.0, %v191
    %v193 = vmul.f32 %v184, %v184
    %v194 = vmul.f32 %v193, -0.00019511016
    %v195 = vadd.f32 %v194, 0.008332121
    %v196 = vmul.f32 %v193, %v195
    %v197 = vadd.f32 %v196, -0.16666654
    %v198 = vmul.f32 %v193, %v197
    %v199 = vadd.f32 %v198, 1.0
    %v200 = vmul.f32 %v199, %v184
    %vm201 = vweird.f32 %v53
    %v202 = vadd.s32 %v185, 3
    %v203 = vand.u32 %v202, 3
    %vm204 = vcmp.lt.s32.totalorder %v203, 2
    %vm205 = vcmp.eq.s32.totalorder %v203, 0
    %v206 = vxor.u32 %v200, 2147483648
    %v207 = vsel %vm205, %v192, %v206
    %vm208 = vcmp.eq.s32.totalorder %v203, 2
    %v209 = vxor.u32 %v192, 2147483648
    %v210 = vsel %vm208, %v209, %v200
    %v211 = vsel %vm204, %v207, %v210
    %v212 = vsel %vm201, nan, %v211
    %v213 = vmul.f32 %v212, %v57
    %v214 = vand.u32 2147483647, %v53
    %vm215 = vcmp.le.f32.partialorder %v214, 0.7853982
    %vm216 = vcmp.lt.s32.totalorder %v53, 0
    %v217 = vand.u32 %v53, 2139095040
    %v218 = vshrl.u32 %v217, 23
    %v219 = vsub.s32 %v218, 127
    %v220 = vand.u32 2147483647, %v53
    %v221 = vand.u32 %v220, 8388607
    %v222 = vor.u32 %v221, 8388608
    %v223 = vsub.s32 0, %v222
    %v224 = vadd.s32 %v219, 1
    %vm225 = vcmp.gt.s32.totalorder %v224, 0
    %v226 = vsel %vm225, %v224, 0
    %v227 = vshrl.u32 %v226, 5
    %v228 = vand.u32 %v226, 31
    %v229 = vsub.s32 32, %v228
    %v230 = vshrl.u32 683565275, %v229
    %v231 = vshll.u32 683565275, %v228
    %v232 = vshrl.u32 2475754826, %v229
    %v233 = vor.u32 %v231, %v232
    %v234 = vshll.u32 2475754826, %v228
    %v235 = vshrl.u32 2131351028, %v229
    %v236 = vor.u32 %v234, %v235
    %v237 = vshll.u32 2131351028, %v228
    %v238 = vshrl.u32 2102212464, %v229
    %v239 = vor.u32 %v237, %v238
    %v240 = vshll.u32 2102212464, %v228
    %v241 = vshrl.u32 920167782, %v229
    %v242 = vor.u32 %v240, %v241
    %v243 = vshll.u32 920167782, %v228
    %v244 = vshrl.u32 1326507024, %v229
    %v245 = vor.u32 %v243, %v244
    %vm246 = vcmp.lt.s32.totalorder %v227, 1
    %vm247 = vcmp.lt.s32.totalorder %v227, 2
    %vm248 = vcmp.lt.s32.totalorder %v227, 3
    %vm249 = vcmp.lt.s32.totalorder %v227, 4
    %v250 = vsel %vm246, %v230, %v233
    %v251 = vsel %vm249, %v239, 2102212464
    %v252 = vsel %vm248, %v236, %v251
    %v253 = vsel %vm247, %v250, %v252
    %v254 = vsel %vm246, %v233, %v236
    %v255 = vsel %vm249, %v242, 920167782
    %v256 = vsel %vm248, %v239, %v255
    %v257 = vsel %vm247, %v254, %v256
    %v258 = vsel %vm246, %v236, %v239
    %v259 = vsel %vm249, %v245, 1326507024
    %v260 = vsel %vm248, %v242, %v259
    %v261 = vsel %vm247, %v258, %v260
    %v262 = vshll.u32 %v222, 8
    %v263 = vand.u32 %v262, 65535
    %v264 = vshrl.u32 %v262, 16
    %v265 = vand.u32 %v261, 65535
    %v266 = vshrl.u32 %v261, 16
    %v267 = vmul.u32 %v263, %v265
    %v268 = vmul.u32 %v263, %v266
    %v269 = vmul.u32 %v264, %v265
    %v270 = vmul.u32 %v264, %v266
    %v271 = vshll.u32 %v268, 16
    %v272 = vshrl.u32 %v268, 16
    %v273 = vshll.u32 %v269, 16
    %v274 = vshrl.u32 %v269, 16
    %vm275 = vc.u32 %v267, %v271
    %v276 = vsel %vm275, 1, 0
    %v277 = vadd.s32 %v267, %v271
    %v278 = vadd.s32 %v270, %v276
    %vm279 = vc.u32 %v277, %v273
    %v280 = vsel %vm279, 1, 0
    %v281 = vadd.s32 %v277, %v273
    %v282 = vadd.s32 %v278, %v280
    %v283 = vadd.s32 %v282, %v272
    %v284 = vadd.s32 %v283, %v274
    %v285 = vand.u32 %v262, 65535
    %v286 = vshrl.u32 %v262, 16
    %v287 = vand.u32 %v257, 65535
    %v288 = vshrl.u32 %v257, 16
    %v289 = vmul.u32 %v285, %v287
    %v290 = vmul.u32 %v285, %v288
    %v291 = vmul.u32 %v286, %v287
    %v292 = vmul.u32 %v286, %v288
    %v293 = vshll.u32 %v290, 16
    %v294 = vshrl.u32 %v290, 16
    %v295 = vshll.u32 %v291, 16
    %v296 = vshrl.u32 %v291, 16
    %vm297 = vc.u32 %v289, %v293
    %v298 = vsel %vm297, 1, 0
    %v299 = vadd.s32 %v289, %v293
    %v300 = vadd.s32 %v292, %v298
    %vm301 = vc.u32 %v299, %v295
    %v302 = vsel %vm301, 1, 0
    %v303 = vadd.s32 %v299, %v295
    %v304 = vadd.s32 %v300, %v302
    %v305 = vadd.s32 %v304, %v294
    %v306 = vadd.s32 %v305, %v296
    %v307 = vmul.u32 %v262, %v253
    %v308 = vadd.s32 %v284, %v303
    %vm309 = vc.u32 %v284, %v303
    %v310 = vadd.s32 %v306, 1
    %v311 = vsel %vm309, %v310, %v306
    %v312 = vadd.s32 %v307, %v311
    %v313 = vadd.s32 %v312, 536870912
    %v314 = vshrl.u32 %v313, 30
    %v315 = vshll.u32 %v314, 30
    %v316 = vsub.s32 %v312, %v315
    %vm317 = vcmp.lt.s32.totalorder %v316, 0
    %v318 = vsub.s32 0, %v316
    %v319 = vsel %vm317, %v318, %v316
    %v320 = vclz %v319
    %v321 = vsub.s32 %v320, 2
    %vm322 = vcmp.gt.s32.totalorder 0, %v321
    %v323 = vsel %vm322, 0, %v321
    %v324 = vsub.s32 32, %v323
    %v325 = vshll.u32 %v316, %v323
    %v326 = vshrl.u32 %v308, %v324
    %v327 = vor.u32 %v325, %v326
    %v328 = vsub.s32 4294967266, %v323
    %v329 = vadd.s32 %v328, 127
    %v330 = vshll.u32 %v329, 23
    %v331 = vor.u32 4788187, %v330
    %v332 = vand.u32 2147483647, %v331
    %v334 = vcvt.s32.f32 %v327
    %v335 = vmul.f32 %v334, %v332
    %v336 = vxor.u32 %v335, 2147483648
    %v337 = vsel %vm216, %v336, %v335
    %v338 = vsub.s32 4, %v314
    %v339 = vsel %vm216, %v338, %v314
    %v340 = vsel %vm215, %v53, %v337
    %v341 = vsel %vm215, 0, %v339
    %v342 = vmul.f32 %v340, %v340
    %v343 = vmul.f32 %v342, -0.001358992
    %v344 = vadd.f32 %v343, 0.041655596
    %v345 = vmul.f32 %v342, %v344
    %v346 = vadd.f32 %v345, -0.4999988
    %v347 = vmul.f32 %v342, %v346
    %v348 = vadd.f32 1.0, %v347
    %v349 = vmul.f32 %v340, %v340
    %v350 = vmul.f32 %v349, -0.00019511016
    %v351 = vadd.f32 %v350, 0.008332121
    %v352 = vmul.f32 %v349, %v351
    %v353 = vadd.f32 %v352, -0.16666654
    %v354 = vmul.f32 %v349, %v353
    %v355 = vadd.f32 %v354, 1.0
    %v356 = vmul.f32 %v355, %v340
    %vm357 = vweird.f32 %v53
    %v358 = vand.u32 %v341, 3
    %vm359 = vcmp.lt.s32.totalorder %v358, 2
    %vm360 = vcmp.eq.s32.totalorder %v358, 0
    %v361 = vxor.u32 %v356, 2147483648
    %v362 = vsel %vm360, %v348, %v361
    %vm363 = vcmp.eq.s32.totalorder %v358, 2
    %v364 = vxor.u32 %v348, 2147483648
    %v365 = vsel %vm363, %v364, %v356
    %v366 = vsel %vm359, %v362, %v365
    %v367 = vsel %vm357, nan, %v366
    %v368 = vsub.f32 1.0, %v367
    %v369 = vmul.f32 %v57, %v57
    %v370 = vmul.f32 %v368, %v369
    %v371 = vmul.f32 %v370, %v25
    %v372 = vmul.f32 %v370, %v27
    %v373 = vmul.f32 %v370, %v29
    %v374 = vmul.f32 %v213, %v25
    %v375 = vmul.f32 %v213, %v27
    %v376 = vmul.f32 %v213, %v29
    %v377 = vmul.f32 %v370, %v40
    %v378 = vsub.f32 1.0, %v377
    %v379 = vmul.f32 %v371, %v25
    %v380 = vadd.f32 %v378, %v379
    %v381 = vmul.f32 %v371, %v27
    %v382 = vsub.f32 %v381, %v376
    %v383 = vmul.f32 %v371, %v29
    %v384 = vadd.f32 %v383, %v375
    %v385 = vadd.f32 %v381, %v376
    %v386 = vmul.f32 %v372, %v27
    %v387 = vadd.f32 %v378, %v386
    %v388 = vmul.f32 %v372, %v29
    %v389 = vsub.f32 %v388, %v374
    %v390 = vsub.f32 %v383, %v375
    %v391 = vadd.f32 %v388, %v374
    %v392 = vmul.f32 %v373, %v29
    %v393 = vadd.f32 %v378, %v392
    %s394 = scalar_lea.vmem [#allocation2], 48
    %v395 = vld [vmem:[%s394] sm:$0xff]
    %s396 = scalar_lea.vmem [#allocation2], 56
    %v397 = vld [vmem:[%s396] sm:$0xff]
    %s398 = scalar_lea.vmem [#allocation2], 64
    %v399 = vld [vmem:[%s398] sm:$0xff]
    %s400 = scalar_lea.vmem [#allocation2], 72
    %v401 = vld [vmem:[%s400] sm:$0xff]
    %s402 = scalar_lea.vmem [#allocation2], 80
    %v403 = vld [vmem:[%s402] sm:$0xff]
    %s404 = scalar_lea.vmem [#allocation2], 88
    %v405 = vld [vmem:[%s404] sm:$0xff]
    %s406 = scalar_lea.vmem [#allocation2], 96
    %v407 = vld [vmem:[%s406] sm:$0xff]
    %s408 = scalar_lea.vmem [#allocation2], 104
    %v409 = vld [vmem:[%s408] sm:$0xff]
    %s410 = scalar_lea.vmem [#allocation2], 112
    %v411 = vld [vmem:[%s410] sm:$0xff]
    %s412 = scalar_lea.vmem [#allocation2], 120
    %v413 = vld [vmem:[%s412] sm:$0xff]
    %s414 = scalar_lea.vmem [#allocation2], 128
    %v415 = vld [vmem:[%s414] sm:$0xff]
    %s416 = scalar_lea.vmem [#allocation2], 136
    %v417 = vld [vmem:[%s416] sm:$0xff]
    %s418 = scalar_lea.vmem [#allocation2], 144
    %v419 = vld [vmem:[%s418] sm:$0xff]
    %s420 = scalar_lea.vmem [#allocation2], 152
    %v421 = vld [vmem:[%s420] sm:$0xff]
    %s422 = scalar_lea.vmem [#allocation2], 160
    %v423 = vld [vmem:[%s422] sm:$0xff]
    %s424 = scalar_lea.vmem [#allocation2], 168
    %v425 = vld [vmem:[%s424] sm:$0xff]
    %v426 = vmul.f32 %v380, %v395
    %v427 = vmul.f32 %v382, %v403
    %v428 = vadd.f32 %v426, %v427
    %v429 = vmul.f32 %v384, %v411
    %v430 = vadd.f32 %v428, %v429
    %v431 = vmul.f32 %v31, %v419
    %v432 = vadd.f32 %v430, %v431
    %433 = vst [vmem:[#allocation5] sm:$0xff] %v432
    %v434 = vmul.f32 %v380, %v397
    %v435 = vmul.f32 %v382, %v405
    %v436 = vadd.f32 %v434, %v435
    %v437 = vmul.f32 %v384, %v413
    %v438 = vadd.f32 %v436, %v437
    %v439 = vmul.f32 %v31, %v421
    %v440 = vadd.f32 %v438, %v439
    %s441 = scalar_lea.vmem [#allocation5], 8
    %442 = vst [vmem:[%s441] sm:$0xff] %v440
    %v443 = vmul.f32 %v380, %v399
    %v444 = vmul.f32 %v382, %v407
    %v445 = vadd.f32 %v443, %v444
    %v446 = vmul.f32 %v384, %v415
    %v447 = vadd.f32 %v445, %v446
    %v448 = vmul.f32 %v31, %v423
    %v449 = vadd.f32 %v447, %v448
    %s450 = scalar_lea.vmem [#allocation5], 16
    %451 = vst [vmem:[%s450] sm:$0xff] %v449
    %v452 = vmul.f32 %v380, %v401
    %v453 = vmul.f32 %v382, %v409
    %v454 = vadd.f32 %v452, %v453
    %v455 = vmul.f32 %v384, %v417
    %v456 = vadd.f32 %v454, %v455
    %v457 = vmul.f32 %v31, %v425
    %v458 = vadd.f32 %v456, %v457
    %s459 = scalar_lea.vmem [#allocation5], 24
    %460 = vst [vmem:[%s459] sm:$0xff] %v458
    %v461 = vmul.f32 %v385, %v395
    %v462 = vmul.f32 %v387, %v403
    %v463 = vadd.f32 %v461, %v462
    %v464 = vmul.f32 %v389, %v411
    %v465 = vadd.f32 %v463, %v464
    %v466 = vmul.f32 %v33, %v419
    %v467 = vadd.f32 %v465, %v466
    %s468 = scalar_lea.vmem [#allocation5], 32
    %469 = vst [vmem:[%s468] sm:$0xff] %v467
    %v470 = vmul.f32 %v385, %v397
    %v471 = vmul.f32 %v387, %v405
    %v472 = vadd.f32 %v470, %v471
    %v473 = vmul.f32 %v389, %v413
    %v474 = vadd.f32 %v472, %v473
    %v475 = vmul.f32 %v33, %v421
    %v476 = vadd.f32 %v474, %v475
    %s477 = scalar_lea.vmem [#allocation5], 40
    %478 = vst [vmem:[%s477] sm:$0xff] %v476
    %v479 = vmul.f32 %v385, %v399
    %v480 = vmul.f32 %v387, %v407
    %v481 = vadd.f32 %v479, %v480
    %v482 = vmul.f32 %v389, %v415
    %v483 = vadd.f32 %v481, %v482
    %v484 = vmul.f32 %v33, %v423
    %v485 = vadd.f32 %v483, %v484
    %s486 = scalar_lea.vmem [#allocation5], 48
    %487 = vst [vmem:[%s486] sm:$0xff] %v485
    %v488 = vmul.f32 %v385, %v401
    %v489 = vmul.f32 %v387, %v409
    %v490 = vadd.f32 %v488, %v489
    %v491 = vmul.f32 %v389, %v417
    %v492 = vadd.f32 %v490, %v491
    %v493 = vmul.f32 %v33, %v425
    %v494 = vadd.f32 %v492, %v493
    %s495 = scalar_lea.vmem [#allocation5], 56
    %496 = vst [vmem:[%s495] sm:$0xff] %v494
    %v497 = vmul.f32 %v390, %v395
    %v498 = vmul.f32 %v391, %v403
    %v499 = vadd.f32 %v497, %v498
    %v500 = vmul.f32 %v393, %v411
    %v501 = vadd.f32 %v499, %v500
    %v502 = vmul.f32 %v35, %v419
    %v503 = vadd.f32 %v501, %v502
    %s504 = scalar_lea.vmem [#allocation5], 64
    %505 = vst [vmem:[%s504] sm:$0xff] %v503
    %v506 = vmul.f32 %v390, %v397
    %v507 = vmul.f32 %v391, %v405
    %v508 = vadd.f32 %v506, %v507
    %v509 = vmul.f32 %v393, %v413
    %v510 = vadd.f32 %v508, %v509
    %v511 = vmul.f32 %v35, %v421
    %v512 = vadd.f32 %v510, %v511
    %s513 = scalar_lea.vmem [#allocation5], 72
    %514 = vst [vmem:[%s513] sm:$0xff] %v512
    %v515 = vmul.f32 %v390, %v399
    %v516 = vmul.f32 %v391, %v407
    %v517 = vadd.f32 %v515, %v516
    %v518 = vmul.f32 %v393, %v415
    %v519 = vadd.f32 %v517, %v518
    %v520 = vmul.f32 %v35, %v423
    %v521 = vadd.f32 %v519, %v520
    %s522 = scalar_lea.vmem [#allocation5], 80
    %523 = vst [vmem:[%s522] sm:$0xff] %v521
    %v524 = vmul.f32 %v390, %v401
    %v525 = vmul.f32 %v391, %v409
    %v526 = vadd.f32 %v524, %v525
    %v527 = vmul.f32 %v393, %v417
    %v528 = vadd.f32 %v526, %v527
    %v529 = vmul.f32 %v35, %v425
    %v530 = vadd.f32 %v528, %v529
    %s531 = scalar_lea.vmem [#allocation5], 88
    %532 = vst [vmem:[%s531] sm:$0xff] %v530
    %v533 = vld [vmem:[%s418] sm:$0xff]
    %v534 = vld [vmem:[%s418 + $0x8] sm:$0xff]
    %v535 = vld [vmem:[%s418 + $0x10] sm:$0xff]
    %v536 = vld [vmem:[%s418 + $0x18] sm:$0xff]
    %s537 = scalar_lea.vmem [#allocation5], 96
    %538 = vst [vmem:[%s537] sm:$0xff] %v533
    %539 = vst [vmem:[%s537 + $0x8] sm:$0xff] %v534
    %540 = vst [vmem:[%s537 + $0x10] sm:$0xff] %v535
    %541 = vst [vmem:[%s537 + $0x18] sm:$0xff] %v536
    // Predicated region
    $region10: #{tpu_custom_call.1} parent=1 // pred_check
      _
    $region11: #{tpu_custom_call.1} parent=1 // pred_check_branch
      %543 = sbr.rel (0) target = $region13
    $region12: #{tpu_custom_call.1} parent=1 // pred_region
      %545 = vsyncadd [#allocation4], 0
      %s546 = sshll.u32 [#allocation5], 4
      %s547 = int_to_ptr.vmem [resolvable:$true] %s546
      %s548 = sshll.u32 %s1, 4
      %s549 = int_to_ptr.hbm [resolvable:$true] %s548
      %554 = dma.vmem_to_hbm [thread:$0]  %s547, 2048, %s549, [#allocation4], 128, 128, 8
    $region13: #{tpu_custom_call.1} parent=1 // pred_fallthru
      _
    // Predicated region
    $region14: #{tpu_custom_call.1} parent=1 // pred_check
      _
    $region15: #{tpu_custom_call.1} parent=1 // pred_check_branch
      %556 = sbr.rel (0) target = $region17
    $region16: #{tpu_custom_call.1} parent=1 // pred_region
      %558 = dma.done [#allocation4], 2048
    $region17: #{tpu_custom_call.1} parent=1 // pred_fallthru
      _
    %559 = vsyncpa [#allocation3], 1
    %560 = vsyncpa [#allocation4], 1

</llo_original>
